<compile_context>
chip_gen: v5e
topology: v5e:2x2
jax: 0.10.0
libtpu: 0.0.40
codegen_flags: <defaults>
</compile_context>

<pallas_src>
import functools

import jax
import jax.numpy as jnp
import numpy as np
from jax.experimental import pallas as pl
from jax.experimental.pallas import tpu as pltpu

FEAT = 256          # BatchNorm1d(256) / Linear(256, out_dim)
BN_EPS = 1e-5       # PyTorch BatchNorm1d default eps


# --------------------------------------------------------------------------------------
# Small-B path: whole batch of one head in a single VMEM block, fully fused.
# --------------------------------------------------------------------------------------
def _fused_head_kernel(x_ref, w_ref, gamma_ref, beta_ref, hw_ref, hb_ref,
                       feat_ref, out_ref):
    """One grid step = one feature set (h in {0: local, 1: global}).

    x_ref:     (B, 2*in_dim)    concatenated [f | e_f] inputs of this head, bf16
    w_ref:     (2*in_dim, 256)  fused stand-in backbone weight [W_a; W_b], bf16
    gamma_ref: (1, 256)         BN weight (VMEM-resident across grid), f32
    beta_ref:  (1, 256)         BN bias   (resident), f32
    hw_ref:    (256, out_pad)   head weight, padded to 128 lanes, bf16 (resident)
    hb_ref:    (1, out_pad)     head bias, padded, f32 (resident)
    feat_ref:  (B, 256)         normalized features (module output), f32
    out_ref:   (B, out_pad)     head logits, lane-dense padded, f32
    """
    # Stand-in backbone projection: one full-depth (K = 2*in_dim) MXU pass, f32 acc.
    x = jnp.tanh(jnp.dot(x_ref[...], w_ref[...], preferred_element_type=jnp.float32))

    # BatchNorm1d, training-mode batch stats (biased variance).  One-pass
    # E[x^2] - mean^2 is safe here: tanh output is bounded, var clamped at 0.
    inv_n = 1.0 / x.shape[0]
    mean = jnp.sum(x, axis=0, keepdims=True) * inv_n
    ex2 = jnp.sum(x * x, axis=0, keepdims=True) * inv_n
    var = jnp.maximum(ex2 - mean * mean, 0.0)
    inv_std = jax.lax.rsqrt(var + BN_EPS)
    xn = (x - mean) * (inv_std * gamma_ref[...]) + beta_ref[...]
    feat_ref[...] = xn

    # Linear head on the MXU: bf16 operands, f32 accumulation, 128-lane-dense output.
    out_ref[...] = (
        jnp.dot(xn.astype(jnp.bfloat16), hw_ref[...],
                preferred_element_type=jnp.float32)
        + hb_ref[...]
    )


# --------------------------------------------------------------------------------------
# Large-B path, pass 1: backbone projection per batch tile + per-head sum / sumsq.
# --------------------------------------------------------------------------------------
def _stats_kernel(x_ref, w_ref, xraw_ref, stats_ref):
    """grid = (2, nb): h outer ("parallel"), batch tile i inner ("arbitrary").

    x_ref:     (TB, 2*in_dim) bf16 input tile
    w_ref:     (2*in_dim, 256) bf16, resident per head
    xraw_ref:  (TB, 256) f32 raw (pre-BN) backbone features for this tile
    stats_ref: (2, 256) f32 accumulator output block, resident across the i axis:
               row 0 = sum(x), row 1 = sum(x*x) for the whole batch of head h.
    """
    i = pl.program_id(1)
    x = jnp.tanh(jnp.dot(x_ref[...], w_ref[...], preferred_element_type=jnp.float32))
    xraw_ref[...] = x

    @pl.when(i == 0)
    def _():
        stats_ref[...] = jnp.zeros_like(stats_ref)

    tile_stats = jnp.concatenate(
        [jnp.sum(x, axis=0, keepdims=True),
         jnp.sum(x * x, axis=0, keepdims=True)], axis=0)        # (2, 256)
    stats_ref[...] += tile_stats


# --------------------------------------------------------------------------------------
# Large-B path, pass 2: normalize each tile with finalized stats + head matmul.
# --------------------------------------------------------------------------------------
def _norm_head_kernel(xraw_ref, stats_ref, gamma_ref, beta_ref, hw_ref, hb_ref,
                      feat_ref, out_ref, *, inv_n):
    x = xraw_ref[...]
    mean = stats_ref[0:1, :] * inv_n
    ex2 = stats_ref[1:2, :] * inv_n
    var = jnp.maximum(ex2 - mean * mean, 0.0)
    inv_std = jax.lax.rsqrt(var + BN_EPS)
    xn = (x - mean) * (inv_std * gamma_ref[...]) + beta_ref[...]
    feat_ref[...] = xn
    out_ref[...] = (
        jnp.dot(xn.astype(jnp.bfloat16), hw_ref[...],
                preferred_element_type=jnp.float32)
        + hb_ref[...]
    )


def _pick_batch_tile(B, max_tile):
    for tb in (max_tile, 1024, 512, 256, 128, 64, 32, 16, 8):
        if tb <= max_tile and tb < B and B % tb == 0:
            return tb
    return None


# --------------------------------------------------------------------------------------
# Wrapper
# --------------------------------------------------------------------------------------
def supervised_net_forward(l_f, e_l_f, g_f, e_g_f, params, label=None, *,
                           batch_tile=512):
    """JAX/Pallas equivalent of supervised_net.forward.

    batch_tile: rows per VMEM block.  B <= batch_tile uses the single fused kernel
    (whole head in one block); larger B uses the batch-tiled two-pass BN.  The 512
    default keeps the fused path comfortably under the v7x 32 MiB scoped-VMEM default
    (~8-10 KiB of VMEM per batch row including double buffers).
    """
    B, in_dim = l_f.shape
    K2 = 2 * in_dim
    out_dim = params["head_w"].shape[1]
    hw = params["head_w_pad"]          # (FEAT, out_pad) bf16, precomputed
    hb = params["head_b_pad"]          # (1, out_pad) f32, precomputed
    out_pad = hw.shape[1]
    gamma, beta = params["bn_gamma"], params["bn_beta"]
    W = params["W"]                    # (2, 2*in_dim, FEAT) bf16

    # Single bf16 operand per head: [l_f | e_l_f] and [g_f | e_g_f] stacked.  The
    # bf16 cast rides the unavoidable stack/concat copy (no separate f32 round trip).
    x_in = jnp.stack([
        jnp.concatenate([l_f, e_l_f], axis=-1),
        jnp.concatenate([g_f, e_g_f], axis=-1),
    ], axis=0).astype(jnp.bfloat16)    # (2, B, 2*in_dim)

    tb = None if B <= batch_tile else _pick_batch_tile(B, batch_tile)

    if tb is None:
        # ------- fused single-block-per-head path (small B) -------
        feat, out = pl.pallas_call(
            _fused_head_kernel,
            out_shape=(
                jax.ShapeDtypeStruct((2, B, FEAT), jnp.float32),
                jax.ShapeDtypeStruct((2, B, out_pad), jnp.float32),
            ),
            grid_spec=pltpu.PrefetchScalarGridSpec(
                num_scalar_prefetch=0,
                grid=(2,),
                in_specs=[
                    pl.BlockSpec((None, B, K2), lambda h: (h, 0, 0)),      # x_in
                    pl.BlockSpec((None, K2, FEAT), lambda h: (h, 0, 0)),   # W
                    pl.BlockSpec((1, FEAT), lambda h: (0, 0)),             # gamma (resident)
                    pl.BlockSpec((1, FEAT), lambda h: (0, 0)),             # beta  (resident)
                    pl.BlockSpec((FEAT, out_pad), lambda h: (0, 0)),       # head_w (resident)
                    pl.BlockSpec((1, out_pad), lambda h: (0, 0)),          # head_b (resident)
                ],
                out_specs=(
                    pl.BlockSpec((None, B, FEAT), lambda h: (h, 0, 0)),
                    pl.BlockSpec((None, B, out_pad), lambda h: (h, 0, 0)),
                ),
            ),
            compiler_params=pltpu.CompilerParams(
                dimension_semantics=("parallel",),
            ),
        )(x_in, W, gamma, beta, hw, hb)
    else:
        # ------- batch-tiled two-pass BN path (large B) -------
        nb = B // tb

        xraw, stats = pl.pallas_call(
            _stats_kernel,
            out_shape=(
                jax.ShapeDtypeStruct((2, B, FEAT), jnp.float32),
                jax.ShapeDtypeStruct((2, 2, FEAT), jnp.float32),
            ),
            grid_spec=pltpu.PrefetchScalarGridSpec(
                num_scalar_prefetch=0,
                grid=(2, nb),
                in_specs=[
                    pl.BlockSpec((None, tb, K2), lambda h, i: (h, i, 0)),
                    pl.BlockSpec((None, K2, FEAT), lambda h, i: (h, 0, 0)),
                ],
                out_specs=(
                    pl.BlockSpec((None, tb, FEAT), lambda h, i: (h, i, 0)),
                    pl.BlockSpec((None, 2, FEAT), lambda h, i: (h, 0, 0)),  # accumulator
                ),
            ),
            compiler_params=pltpu.CompilerParams(
                dimension_semantics=("parallel", "arbitrary"),
            ),
        )(x_in, W)

        feat, out = pl.pallas_call(
            functools.partial(_norm_head_kernel, inv_n=1.0 / B),
            out_shape=(
                jax.ShapeDtypeStruct((2, B, FEAT), jnp.float32),
                jax.ShapeDtypeStruct((2, B, out_pad), jnp.float32),
            ),
            grid_spec=pltpu.PrefetchScalarGridSpec(
                num_scalar_prefetch=0,
                grid=(2, nb),
                in_specs=[
                    pl.BlockSpec((None, tb, FEAT), lambda h, i: (h, i, 0)),   # raw x
                    pl.BlockSpec((None, 2, FEAT), lambda h, i: (h, 0, 0)),    # stats (resident)
                    pl.BlockSpec((1, FEAT), lambda h, i: (0, 0)),             # gamma
                    pl.BlockSpec((1, FEAT), lambda h, i: (0, 0)),             # beta
                    pl.BlockSpec((FEAT, out_pad), lambda h, i: (0, 0)),       # head_w
                    pl.BlockSpec((1, out_pad), lambda h, i: (0, 0)),          # head_b
                ],
                out_specs=(
                    pl.BlockSpec((None, tb, FEAT), lambda h, i: (h, i, 0)),
                    pl.BlockSpec((None, tb, out_pad), lambda h, i: (h, i, 0)),
                ),
            ),
            compiler_params=pltpu.CompilerParams(
                dimension_semantics=("parallel", "arbitrary"),
            ),
        )(xraw, stats, gamma, beta, hw, hb)

    feat1, feat2 = feat[0], feat[1]
    if label is not None:
        return feat1, out[0, :, :out_dim], feat2, out[1, :, :out_dim]
    return feat1, feat2


# --------------------------------------------------------------------------------------
# Parameters & pure-JAX reference
# --------------------------------------------------------------------------------------
def init_params(key, in_dim, out_dim):
    k1, k2, k3, k4, k5 = jax.random.split(key, 5)
    bound = 1.0 / np.sqrt(FEAT)
    out_pad = max(128, int(pl.cdiv(out_dim, 128)) * 128)

    head_w = jax.random.uniform(k2, (FEAT, out_dim), jnp.float32, -bound, bound)
    head_b = jax.random.uniform(k3, (1, out_dim), jnp.float32, -bound, bound)
    head_w_pad = jnp.zeros((FEAT, out_pad), jnp.bfloat16)
    head_w_pad = head_w_pad.at[:, :out_dim].set(head_w.astype(jnp.bfloat16))
    head_b_pad = jnp.zeros((1, out_pad), jnp.float32)
    head_b_pad = head_b_pad.at[:, :out_dim].set(head_b)

    return {
        # Stand-in backbone: fused weight [W_a; W_b] along K = 2*in_dim, per head.
        # TODO(synk): the real backbone `net` is injected at construction time and is
        # not part of this module; this deterministic tanh(linear) projection is glue.
        "W": (jax.random.normal(k1, (2, 2 * in_dim, FEAT), jnp.float32) * 0.05
              ).astype(jnp.bfloat16),
        # BatchNorm1d(256).  PyTorch default init is gamma=1, beta=0; random values are
        # used here only so the numerics check actually exercises the affine path.
        "bn_gamma": 1.0 + 0.1 * jax.random.normal(k4, (1, FEAT), jnp.float32),
        "bn_beta": 0.1 * jax.random.normal(k5, (1, FEAT), jnp.float32),
        # Linear(256, out_dim): uniform(-1/sqrt(256), 1/sqrt(256)), stored (in, out).
        "head_w": head_w,
        "head_b": head_b,
        # Precomputed padded / lane-dense / bf16 head params (avoids per-call pad+cast).
        "head_w_pad": head_w_pad,
        "head_b_pad": head_b_pad,
    }


def reference_forward(l_f, e_l_f, g_f, e_g_f, params):
    """Pure-JAX f32 reference mirroring the module semantics."""
    def head(x1, x2, w):
        x = jnp.tanh(jnp.concatenate([x1, x2], axis=-1) @ w.astype(jnp.float32))
        mean = jnp.mean(x, axis=0, keepdims=True)
        var = jnp.mean((x - mean) ** 2, axis=0, keepdims=True)   # biased (train mode)
        xn = (x - mean) / jnp.sqrt(var + BN_EPS) * params["bn_gamma"] + params["bn_beta"]
        out = xn @ params["head_w"] + params["head_b"]
        return xn, out

    f1, o1 = head(l_f, e_l_f, params["W"][0])
    f2, o2 = head(g_f, e_g_f, params["W"][1])
    return f1, o1, f2, o2


# --------------------------------------------------------------------------------------
if __name__ == "__main__":
    IN_DIM = 128   # per-input feature width fed to the stand-in backbone
    OUT_DIM = 100  # module default out_dim

    key = jax.random.PRNGKey(0)
    kp, k1, k2, k3, k4, k5 = jax.random.split(key, 6)
    params = init_params(kp, IN_DIM, OUT_DIM)

    fwd = jax.jit(supervised_net_forward, static_argnames=("batch_tile",))

    # ---- small batch: fused single-block-per-head path ----
    B = 8
    l_f = jax.random.normal(k1, (B, IN_DIM), jnp.float32)
    e_l_f = jax.random.normal(k2, (B, IN_DIM), jnp.float32)
    g_f = jax.random.normal(k3, (B, IN_DIM), jnp.float32)
    e_g_f = jax.random.normal(k4, (B, IN_DIM), jnp.float32)
    label = jnp.zeros((B,), jnp.int32)  # presence of label selects the 4-tuple path

    feat1, out1, feat2, out2 = fwd(l_f, e_l_f, g_f, e_g_f, params, label)
    jax.block_until_ready((feat1, out1, feat2, out2))
    assert feat1.shape == (B, FEAT) and feat2.shape == (B, FEAT)
    assert out1.shape == (B, OUT_DIM) and out2.shape == (B, OUT_DIM)

    rf1, ro1, rf2, ro2 = reference_forward(l_f, e_l_f, g_f, e_g_f, params)
    np.testing.assert_allclose(np.asarray(feat1), np.asarray(rf1), rtol=5e-2, atol=5e-2)
    np.testing.assert_allclose(np.asarray(feat2), np.asarray(rf2), rtol=5e-2, atol=5e-2)
    np.testing.assert_allclose(np.asarray(out1), np.asarray(ro1), rtol=5e-2, atol=5e-2)
    np.testing.assert_allclose(np.asarray(out2), np.asarray(ro2), rtol=5e-2, atol=5e-2)

    # label=None path
    f1, f2 = fwd(l_f, e_l_f, g_f, e_g_f, params, None)
    jax.block_until_ready((f1, f2))
    assert f1.shape == (B, FEAT) and f2.shape == (B, FEAT)

    # ---- larger batch: exercise the batch-tiled two-pass BN path (TB=128, 2 tiles) ----
    B2 = 256
    kk = jax.random.split(k5, 4)
    l2 = jax.random.normal(kk[0], (B2, IN_DIM), jnp.float32)
    el2 = jax.random.normal(kk[1], (B2, IN_DIM), jnp.float32)
    g2 = jax.random.normal(kk[2], (B2, IN_DIM), jnp.float32)
    eg2 = jax.random.normal(kk[3], (B2, IN_DIM), jnp.float32)
    label2 = jnp.zeros((B2,), jnp.int32)

    tfeat1, tout1, tfeat2, tout2 = fwd(l2, el2, g2, eg2, params, label2, batch_tile=128)
    jax.block_until_ready((tfeat1, tout1, tfeat2, tout2))
    assert tfeat1.shape == (B2, FEAT) and tout1.shape == (B2, OUT_DIM)

    trf1, tro1, trf2, tro2 = reference_forward(l2, el2, g2, eg2, params)
    np.testing.assert_allclose(np.asarray(tfeat1), np.asarray(trf1), rtol=5e-2, atol=5e-2)
    np.testing.assert_allclose(np.asarray(tfeat2), np.asarray(trf2), rtol=5e-2, atol=5e-2)
    np.testing.assert_allclose(np.asarray(tout1), np.asarray(tro1), rtol=5e-2, atol=5e-2)
    np.testing.assert_allclose(np.asarray(tout2), np.asarray(tro2), rtol=5e-2, atol=5e-2)

    print("KERNEL_OK")
</pallas_src>

<mosaic_0001>
module attributes {stable_mosaic.version = 11 : i64} {
  func.func @_fused_head_kernel(%arg0: i32, %arg1: memref<1x8x256xbf16, #tpu.memory_space<vmem>>, %arg2: memref<1x256x256xbf16, #tpu.memory_space<vmem>>, %arg3: memref<1x256xf32, #tpu.memory_space<vmem>>, %arg4: memref<1x256xf32, #tpu.memory_space<vmem>>, %arg5: memref<256x128xbf16, #tpu.memory_space<vmem>>, %arg6: memref<1x128xf32, #tpu.memory_space<vmem>>, %arg7: memref<1x8x256xf32, #tpu.memory_space<vmem>>, %arg8: memref<1x8x128xf32, #tpu.memory_space<vmem>>) attributes {dimension_semantics = [#tpu.dimension_semantics<parallel>], iteration_bounds = array<i64: 2>, scalar_prefetch = 0 : i64, scratch_operands = 0 : i64, tpu.core_type = #tpu.core_type<tc>, window_params = [{transform_indices = @transform_0, window_bounds = array<i64: 1, 8, 256>}, {transform_indices = @transform_1, window_bounds = array<i64: 1, 256, 256>}, {pipeline_mode = #tpu.pipeline_mode<synchronous>, transform_indices = @transform_2, window_bounds = array<i64: 1, 256>}, {pipeline_mode = #tpu.pipeline_mode<synchronous>, transform_indices = @transform_3, window_bounds = array<i64: 1, 256>}, {pipeline_mode = #tpu.pipeline_mode<synchronous>, transform_indices = @transform_4, window_bounds = array<i64: 256, 128>}, {pipeline_mode = #tpu.pipeline_mode<synchronous>, transform_indices = @transform_5, window_bounds = array<i64: 1, 128>}, {transform_indices = @transform_6, window_bounds = array<i64: 1, 8, 256>}, {transform_indices = @transform_7, window_bounds = array<i64: 1, 8, 128>}]} {
    %c0 = arith.constant 0 : index
    %c0_0 = arith.constant 0 : index
    %c0_1 = arith.constant 0 : index
    %0 = vector.load %arg1[%c0, %c0_0, %c0_1] : memref<1x8x256xbf16, #tpu.memory_space<vmem>>, vector<1x8x256xbf16>
    %1 = vector.shape_cast %0 : vector<1x8x256xbf16> to vector<8x256xbf16>
    %c0_2 = arith.constant 0 : index
    %c0_3 = arith.constant 0 : index
    %c0_4 = arith.constant 0 : index
    %2 = vector.load %arg2[%c0_2, %c0_3, %c0_4] : memref<1x256x256xbf16, #tpu.memory_space<vmem>>, vector<1x256x256xbf16>
    %3 = vector.shape_cast %2 : vector<1x256x256xbf16> to vector<256x256xbf16>
    %cst = arith.constant dense<0.000000e+00> : vector<8x256xf32>
    %4 = tpu.matmul %1, %3, %cst {dimension_numbers = #tpu.dot_dimension_numbers<[1], [0], [0], [1], [0, 0, 1, 1], [], []>} : vector<8x256xbf16>, vector<256x256xbf16>, vector<8x256xf32> -> vector<8x256xf32>
    %5 = math.tanh %4 : vector<8x256xf32>
    %cst_5 = arith.constant dense<0.000000e+00> : vector<256xf32>
    %6 = vector.multi_reduction <add>, %5, %cst_5 [0] : vector<8x256xf32> to vector<256xf32>
    %7 = vector.shape_cast %6 : vector<256xf32> to vector<1x256xf32>
    %cst_6 = arith.constant 1.250000e-01 : f32
    %8 = vector.broadcast %cst_6 : f32 to vector<1x256xf32>
    %9 = arith.mulf %7, %8 : vector<1x256xf32>
    %10 = arith.mulf %5, %5 : vector<8x256xf32>
    %cst_7 = arith.constant dense<0.000000e+00> : vector<256xf32>
    %11 = vector.multi_reduction <add>, %10, %cst_7 [0] : vector<8x256xf32> to vector<256xf32>
    %12 = vector.shape_cast %11 : vector<256xf32> to vector<1x256xf32>
    %cst_8 = arith.constant 1.250000e-01 : f32
    %13 = vector.broadcast %cst_8 : f32 to vector<1x256xf32>
    %14 = arith.mulf %12, %13 : vector<1x256xf32>
    %15 = arith.mulf %9, %9 : vector<1x256xf32>
    %16 = arith.subf %14, %15 : vector<1x256xf32>
    %cst_9 = arith.constant 0.000000e+00 : f32
    %17 = vector.broadcast %cst_9 : f32 to vector<1x256xf32>
    %18 = arith.maximumf %16, %17 : vector<1x256xf32>
    %cst_10 = arith.constant 9.99999974E-6 : f32
    %19 = vector.broadcast %cst_10 : f32 to vector<1x256xf32>
    %20 = arith.addf %18, %19 : vector<1x256xf32>
    %21 = math.rsqrt %20 : vector<1x256xf32>
    %22 = vector.broadcast %9 : vector<1x256xf32> to vector<8x256xf32>
    %23 = arith.subf %5, %22 : vector<8x256xf32>
    %c0_11 = arith.constant 0 : index
    %c0_12 = arith.constant 0 : index
    %24 = vector.load %arg3[%c0_11, %c0_12] : memref<1x256xf32, #tpu.memory_space<vmem>>, vector<1x256xf32>
    %25 = arith.mulf %21, %24 : vector<1x256xf32>
    %26 = vector.broadcast %25 : vector<1x256xf32> to vector<8x256xf32>
    %27 = arith.mulf %23, %26 : vector<8x256xf32>
    %c0_13 = arith.constant 0 : index
    %c0_14 = arith.constant 0 : index
    %28 = vector.load %arg4[%c0_13, %c0_14] : memref<1x256xf32, #tpu.memory_space<vmem>>, vector<1x256xf32>
    %29 = vector.broadcast %28 : vector<1x256xf32> to vector<8x256xf32>
    %30 = arith.addf %27, %29 : vector<8x256xf32>
    %c0_15 = arith.constant 0 : index
    %c0_16 = arith.constant 0 : index
    %c0_17 = arith.constant 0 : index
    %31 = vector.load %arg7[%c0_15, %c0_16, %c0_17] : memref<1x8x256xf32, #tpu.memory_space<vmem>>, vector<1x8x256xf32>
    %32 = vector.shape_cast %31 : vector<1x8x256xf32> to vector<8x256xf32>
    %33 = vector.shape_cast %30 : vector<8x256xf32> to vector<1x8x256xf32>
    tpu.vector_store %arg7[%c0_15, %c0_16, %c0_17], %33 {strides = array<i32>} : memref<1x8x256xf32, #tpu.memory_space<vmem>>, vector<1x8x256xf32>,
    %34 = arith.truncf %30 : vector<8x256xf32> to vector<8x256xbf16>
    %c0_18 = arith.constant 0 : index
    %c0_19 = arith.constant 0 : index
    %35 = vector.load %arg5[%c0_18, %c0_19] : memref<256x128xbf16, #tpu.memory_space<vmem>>, vector<256x128xbf16>
    %cst_20 = arith.constant dense<0.000000e+00> : vector<8x128xf32>
    %36 = tpu.matmul %34, %35, %cst_20 {dimension_numbers = #tpu.dot_dimension_numbers<[1], [0], [0], [1], [0, 0, 1, 1], [], []>} : vector<8x256xbf16>, vector<256x128xbf16>, vector<8x128xf32> -> vector<8x128xf32>
    %c0_21 = arith.constant 0 : index
    %c0_22 = arith.constant 0 : index
    %37 = vector.load %arg6[%c0_21, %c0_22] : memref<1x128xf32, #tpu.memory_space<vmem>>, vector<1x128xf32>
    %38 = vector.broadcast %37 : vector<1x128xf32> to vector<8x128xf32>
    %39 = arith.addf %36, %38 : vector<8x128xf32>
    %c0_23 = arith.constant 0 : index
    %c0_24 = arith.constant 0 : index
    %c0_25 = arith.constant 0 : index
    %40 = vector.load %arg8[%c0_23, %c0_24, %c0_25] : memref<1x8x128xf32, #tpu.memory_space<vmem>>, vector<1x8x128xf32>
    %41 = vector.shape_cast %40 : vector<1x8x128xf32> to vector<8x128xf32>
    %42 = vector.shape_cast %39 : vector<8x128xf32> to vector<1x8x128xf32>
    tpu.vector_store %arg8[%c0_23, %c0_24, %c0_25], %42 {strides = array<i32>} : memref<1x8x128xf32, #tpu.memory_space<vmem>>, vector<1x8x128xf32>,
    return
  }
  func.func @transform_0(%arg0: i32) -> (i32, i32, i32) {
    %c0_i32 = arith.constant 0 : i32
    %c0_i32_0 = arith.constant 0 : i32
    %c0_i32_1 = arith.constant 0 : i32
    return %arg0, %c0_i32, %c0_i32_0 : i32, i32, i32
  }
  func.func @transform_1(%arg0: i32) -> (i32, i32, i32) {
    %c0_i32 = arith.constant 0 : i32
    %c0_i32_0 = arith.constant 0 : i32
    %c0_i32_1 = arith.constant 0 : i32
    return %arg0, %c0_i32, %c0_i32_0 : i32, i32, i32
  }
  func.func @transform_2(%arg0: i32) -> (i32, i32) {
    %c0_i32 = arith.constant 0 : i32
    %c0_i32_0 = arith.constant 0 : i32
    %c0_i32_1 = arith.constant 0 : i32
    return %c0_i32, %c0_i32_0 : i32, i32
  }
  func.func @transform_3(%arg0: i32) -> (i32, i32) {
    %c0_i32 = arith.constant 0 : i32
    %c0_i32_0 = arith.constant 0 : i32
    %c0_i32_1 = arith.constant 0 : i32
    return %c0_i32, %c0_i32_0 : i32, i32
  }
  func.func @transform_4(%arg0: i32) -> (i32, i32) {
    %c0_i32 = arith.constant 0 : i32
    %c0_i32_0 = arith.constant 0 : i32
    %c0_i32_1 = arith.constant 0 : i32
    return %c0_i32, %c0_i32_0 : i32, i32
  }
  func.func @transform_5(%arg0: i32) -> (i32, i32) {
    %c0_i32 = arith.constant 0 : i32
    %c0_i32_0 = arith.constant 0 : i32
    %c0_i32_1 = arith.constant 0 : i32
    return %c0_i32, %c0_i32_0 : i32, i32
  }
  func.func @transform_6(%arg0: i32) -> (i32, i32, i32) {
    %c0_i32 = arith.constant 0 : i32
    %c0_i32_0 = arith.constant 0 : i32
    %c0_i32_1 = arith.constant 0 : i32
    return %arg0, %c0_i32, %c0_i32_0 : i32, i32, i32
  }
  func.func @transform_7(%arg0: i32) -> (i32, i32, i32) {
    %c0_i32 = arith.constant 0 : i32
    %c0_i32_0 = arith.constant 0 : i32
    %c0_i32_1 = arith.constant 0 : i32
    return %arg0, %c0_i32, %c0_i32_0 : i32, i32, i32
  }
}

</mosaic_0001>

<llo_original>
// kernel: supervised_net_forward.1
$region0: #{supervised_net_forward.1}
  #allocation0 [shape = 'u32[]', space=smem, size = 0x4, offset = 0x4, fixed_abs, tag = 'smem constant byte address 0x4 - core index']
  #allocation1 [shape = 'u32[72,128]{1,0:T(1,128)}', space=vmem, size = 0x9000, scoped, tag = 'internal scratch']
  %s0 = inlined_call_operand.vmem [shape: bf16[2,8,256], index: 0, kind: input, shape index: {}]
  %s1 = inlined_call_operand.hbm [shape: bf16[2,256,256], index: 1, kind: input, shape index: {}]
  %s2 = inlined_call_operand.vmem [shape: f32[1,256], index: 2, kind: input, shape index: {}]
  %s3 = inlined_call_operand.vmem [shape: f32[1,256], index: 3, kind: input, shape index: {}]
  %s4 = inlined_call_operand.hbm [shape: bf16[256,128], index: 4, kind: input, shape index: {}]
  %s5 = inlined_call_operand.vmem [shape: f32[1,128], index: 5, kind: input, shape index: {}]
  %s6 = inlined_call_operand.vmem [shape: f32[2,8,256], index: 6, kind: output, shape index: {0}]
  %s7 = inlined_call_operand.vmem [shape: f32[2,8,128], index: 7, kind: output, shape index: {1}]
  %8 = xla_tuple %s6, %s7
  %s9 = sld [smem:[#allocation0]]
  $region73: #{supervised_net_forward.1} parent=0
    _
  %s11 = ssub.s32 1, %s9
  %s12 = scalar_select 0, %s11, %s9
  $region1: #{supervised_net_forward.1} parent=0
    #allocation2 [shape = 'u8[262144]{0}', space=vmem, size = 0x40000, scoped, tag = 'input window, operand 1']
    #allocation3 [shape = 's32[2]{0}', space=sflag, size = 0x8, scoped, tag = 'scoped memory for supervised_net_forward.1']
    #allocation4 [shape = 'u8[65536]{0}', space=vmem, size = 0x10000, scoped, tag = 'input window, operand 4, single buffered']
    #allocation5 [shape = 's32[1]{0}', space=sflag, size = 0x4, scoped, tag = 'scoped memory for supervised_net_forward.1']
    %13 = vsyncpa [#allocation3], 0
    %s14 = scalar_lea.sflag [#allocation3], 1
    %15 = vsyncpa %s14, 0
    %16 = vsyncpa [#allocation5], 0
    loop: start=0, step=1, limit=4
    $region2: #{supervised_net_forward.1} parent=1 // loop_pre_header
      _
    $region3: #{supervised_net_forward.1} parent=1 // loop_header
      %s18 = sphi 0, %s22
      %p19 = scmp.ge.s32.totalorder %s18, 4
      %s28 = sphi 0, %s30
      %s31 = sphi 0, %s28
      %s32 = sphi 0, %s31
      %s48 = sphi 0, %s32
      %s54 = sphi 0, %s56
      %s57 = sphi 0, %s54
      %s58 = sphi 0, %s57
      %s74 = sphi 0, %s58
      %s78 = sphi 0, %s78
      %s80 = sphi 0, %s78
      %s81 = sphi 0, %s80
      %s95 = sphi 0, %s81
      %s99 = sphi 0, %s99
      %s101 = sphi 0, %s99
      %s102 = sphi 0, %s101
      %s116 = sphi 0, %s102
      %s120 = sphi 0, %s120
      %s122 = sphi 0, %s120
      %s123 = sphi 0, %s122
      %s137 = sphi 0, %s123
      %s141 = sphi 0, %s141
      %s143 = sphi 0, %s141
      %s144 = sphi 0, %s143
      %s158 = sphi 0, %s144
      %s164 = sphi 0, %s166
      %s167 = sphi 0, %s164
      %s168 = sphi 0, %s167
      %s184 = sphi 0, %s168
      %s190 = sphi 0, %s192
      %s193 = sphi 0, %s190
      %s194 = sphi 0, %s193
      %s210 = sphi 0, %s194
    $region4: #{supervised_net_forward.1} parent=1 // loop_header_branch
      %21 = sbr.rel (%p19) target = $region8
    $region5: #{supervised_net_forward.1} parent=1 // loop_body
      %s23 = ssub.s32 %s18, 1
      %s24 = ssub.s32 %s18, 2
      %s25 = sadd.s32 %s18, 1
      %s26 = ssub.s32 %s18, %s25
      %p27 = scmp.eq.s32.totalorder %s26, 0
      %s29 = sadd.s32 %s28, 1
      %s30 = scalar_select %p27, %s28, %s29
      %p33 = pneg %p27
      %p34 = scmp.eq.s32.totalorder %s18, 1
      %p35 = por %p33, %p34
      %p36 = scmp.ne.s32.totalorder %s28, %s31
      %p37 = scmp.eq.s32.totalorder %s18, 0
      %p38 = por %p36, %p37
      %p39 = scmp.ne.s32.totalorder %s28, %s31
      %p40 = scmp.eq.s32.totalorder %s23, 1
      %p41 = por %p39, %p40
      %p42 = scmp.ne.s32.totalorder %s31, %s32
      %p43 = scmp.eq.s32.totalorder %s23, 0
      %p44 = por %p42, %p43
      %p45 = scmp.ne.s32.totalorder %s31, %s32
      %p46 = scmp.eq.s32.totalorder %s24, 1
      %p47 = por %p45, %p46
      %p49 = scmp.ne.s32.totalorder %s32, %s48
      %p50 = scmp.eq.s32.totalorder %s24, 0
      %p51 = por %p49, %p50
      %s52 = ssub.s32 %s18, %s25
      %p53 = scmp.eq.s32.totalorder %s52, 0
      %s55 = sadd.s32 %s54, 1
      %s56 = scalar_select %p53, %s54, %s55
      %p59 = pneg %p53
      %p60 = scmp.eq.s32.totalorder %s18, 1
      %p61 = por %p59, %p60
      %p62 = scmp.ne.s32.totalorder %s54, %s57
      %p63 = scmp.eq.s32.totalorder %s18, 0
      %p64 = por %p62, %p63
      %p65 = scmp.ne.s32.totalorder %s54, %s57
      %p66 = scmp.eq.s32.totalorder %s23, 1
      %p67 = por %p65, %p66
      %p68 = scmp.ne.s32.totalorder %s57, %s58
      %p69 = scmp.eq.s32.totalorder %s23, 0
      %p70 = por %p68, %p69
      %p71 = scmp.ne.s32.totalorder %s57, %s58
      %p72 = scmp.eq.s32.totalorder %s24, 1
      %p73 = por %p71, %p72
      %p75 = scmp.ne.s32.totalorder %s58, %s74
      %p76 = scmp.eq.s32.totalorder %s24, 0
      %p77 = por %p75, %p76
      %s79 = sadd.s32 %s78, 1
      %p82 = scmp.eq.s32.totalorder %s18, 1
      %p83 = scmp.ne.s32.totalorder %s78, %s80
      %p84 = scmp.eq.s32.totalorder %s18, 0
      %p85 = por %p83, %p84
      %p86 = scmp.ne.s32.totalorder %s78, %s80
      %p87 = scmp.eq.s32.totalorder %s23, 1
      %p88 = por %p86, %p87
      %p89 = scmp.ne.s32.totalorder %s80, %s81
      %p90 = scmp.eq.s32.totalorder %s23, 0
      %p91 = por %p89, %p90
      %p92 = scmp.ne.s32.totalorder %s80, %s81
      %p93 = scmp.eq.s32.totalorder %s24, 1
      %p94 = por %p92, %p93
      %p96 = scmp.ne.s32.totalorder %s81, %s95
      %p97 = scmp.eq.s32.totalorder %s24, 0
      %p98 = por %p96, %p97
      %s100 = sadd.s32 %s99, 1
      %p103 = scmp.eq.s32.totalorder %s18, 1
      %p104 = scmp.ne.s32.totalorder %s99, %s101
      %p105 = scmp.eq.s32.totalorder %s18, 0
      %p106 = por %p104, %p105
      %p107 = scmp.ne.s32.totalorder %s99, %s101
      %p108 = scmp.eq.s32.totalorder %s23, 1
      %p109 = por %p107, %p108
      %p110 = scmp.ne.s32.totalorder %s101, %s102
      %p111 = scmp.eq.s32.totalorder %s23, 0
      %p112 = por %p110, %p111
      %p113 = scmp.ne.s32.totalorder %s101, %s102
      %p114 = scmp.eq.s32.totalorder %s24, 1
      %p115 = por %p113, %p114
      %p117 = scmp.ne.s32.totalorder %s102, %s116
      %p118 = scmp.eq.s32.totalorder %s24, 0
      %p119 = por %p117, %p118
      %s121 = sadd.s32 %s120, 1
      %p124 = scmp.eq.s32.totalorder %s18, 1
      %p125 = scmp.ne.s32.totalorder %s120, %s122
      %p126 = scmp.eq.s32.totalorder %s18, 0
      %p127 = por %p125, %p126
      %p128 = scmp.ne.s32.totalorder %s120, %s122
      %p129 = scmp.eq.s32.totalorder %s23, 1
      %p130 = por %p128, %p129
      %p131 = scmp.ne.s32.totalorder %s122, %s123
      %p132 = scmp.eq.s32.totalorder %s23, 0
      %p133 = por %p131, %p132
      %p134 = scmp.ne.s32.totalorder %s122, %s123
      %p135 = scmp.eq.s32.totalorder %s24, 1
      %p136 = por %p134, %p135
      %p138 = scmp.ne.s32.totalorder %s123, %s137
      %p139 = scmp.eq.s32.totalorder %s24, 0
      %p140 = por %p138, %p139
      %s142 = sadd.s32 %s141, 1
      %p145 = scmp.eq.s32.totalorder %s18, 1
      %p146 = scmp.ne.s32.totalorder %s141, %s143
      %p147 = scmp.eq.s32.totalorder %s18, 0
      %p148 = por %p146, %p147
      %p149 = scmp.ne.s32.totalorder %s141, %s143
      %p150 = scmp.eq.s32.totalorder %s23, 1
      %p151 = por %p149, %p150
      %p152 = scmp.ne.s32.totalorder %s143, %s144
      %p153 = scmp.eq.s32.totalorder %s23, 0
      %p154 = por %p152, %p153
      %p155 = scmp.ne.s32.totalorder %s143, %s144
      %p156 = scmp.eq.s32.totalorder %s24, 1
      %p157 = por %p155, %p156
      %p159 = scmp.ne.s32.totalorder %s144, %s158
      %p160 = scmp.eq.s32.totalorder %s24, 0
      %p161 = por %p159, %p160
      %s162 = ssub.s32 %s18, %s25
      %p163 = scmp.eq.s32.totalorder %s162, 0
      %s165 = sadd.s32 %s164, 1
      %s166 = scalar_select %p163, %s164, %s165
      %p169 = pneg %p163
      %p170 = scmp.eq.s32.totalorder %s18, 1
      %p171 = por %p169, %p170
      %p172 = scmp.ne.s32.totalorder %s164, %s167
      %p173 = scmp.eq.s32.totalorder %s18, 0
      %p174 = por %p172, %p173
      %p175 = scmp.ne.s32.totalorder %s164, %s167
      %p176 = scmp.eq.s32.totalorder %s23, 1
      %p177 = por %p175, %p176
      %p178 = scmp.ne.s32.totalorder %s167, %s168
      %p179 = scmp.eq.s32.totalorder %s23, 0
      %p180 = por %p178, %p179
      %p181 = scmp.ne.s32.totalorder %s167, %s168
      %p182 = scmp.eq.s32.totalorder %s24, 1
      %p183 = por %p181, %p182
      %p185 = scmp.ne.s32.totalorder %s168, %s184
      %p186 = scmp.eq.s32.totalorder %s24, 0
      %p187 = por %p185, %p186
      %s188 = ssub.s32 %s18, %s25
      %p189 = scmp.eq.s32.totalorder %s188, 0
      %s191 = sadd.s32 %s190, 1
      %s192 = scalar_select %p189, %s190, %s191
      %p195 = pneg %p189
      %p196 = scmp.eq.s32.totalorder %s18, 1
      %p197 = por %p195, %p196
      %p198 = scmp.ne.s32.totalorder %s190, %s193
      %p199 = scmp.eq.s32.totalorder %s18, 0
      %p200 = por %p198, %p199
      %p201 = scmp.ne.s32.totalorder %s190, %s193
      %p202 = scmp.eq.s32.totalorder %s23, 1
      %p203 = por %p201, %p202
      %p204 = scmp.ne.s32.totalorder %s193, %s194
      %p205 = scmp.eq.s32.totalorder %s23, 0
      %p206 = por %p204, %p205
      %p207 = scmp.ne.s32.totalorder %s193, %s194
      %p208 = scmp.eq.s32.totalorder %s24, 1
      %p209 = por %p207, %p208
      %p211 = scmp.ne.s32.totalorder %s194, %s210
      %p212 = scmp.eq.s32.totalorder %s24, 0
      %p213 = por %p211, %p212
      %p214 = scmp.le.s32.totalorder 1, %s18
      %p215 = scmp.lt.s32.totalorder %s18, 3
      %p216 = pnand %p214, %p215
      %p217 = pneg %p216
      // Predicated region
      $region9: #{supervised_net_forward.1} parent=5 // pred_check
        _
      $region10: #{supervised_net_forward.1} parent=5 // pred_check_branch
        %219 = sbr.rel (%p216) target = $region12
      $region11: #{supervised_net_forward.1} parent=5 // pred_region
        %s220 = ssub.s32 %s18, 1
        // Predicated region
        $region13: #{supervised_net_forward.1} parent=11 // pred_check
          %p221 = pneg %p91
        $region14: #{supervised_net_forward.1} parent=11 // pred_check_branch
          %223 = sbr.rel (%p221) target = $region16
        $region15: #{supervised_net_forward.1} parent=11 // pred_region
          _
        $region16: #{supervised_net_forward.1} parent=11 // pred_fallthru
          _
        // Predicated region
        $region17: #{supervised_net_forward.1} parent=11 // pred_check
          %p224 = pneg %p112
        $region18: #{supervised_net_forward.1} parent=11 // pred_check_branch
          %226 = sbr.rel (%p224) target = $region20
        $region19: #{supervised_net_forward.1} parent=11 // pred_region
          _
        $region20: #{supervised_net_forward.1} parent=11 // pred_fallthru
          _
        // Predicated region
        $region21: #{supervised_net_forward.1} parent=11 // pred_check
          %p227 = pneg %p133
        $region22: #{supervised_net_forward.1} parent=11 // pred_check_branch
          %229 = sbr.rel (%p227) target = $region24
        $region23: #{supervised_net_forward.1} parent=11 // pred_region
          %231 = vsyncadd [#allocation5], 0
          %s232 = sshll.u32 %s4, 4
          %s233 = int_to_ptr.hbm [resolvable:$true] %s232
          %s234 = sshll.u32 [#allocation4], 4
          %s235 = int_to_ptr.vmem [resolvable:$true] %s234
          %240 = dma.hbm_to_vmem [thread:$0]  %s233, 2048, %s235, [#allocation5], 64, 64, 4
        $region24: #{supervised_net_forward.1} parent=11 // pred_fallthru
          _
        // Predicated region
        $region25: #{supervised_net_forward.1} parent=11 // pred_check
          %p241 = pneg %p154
        $region26: #{supervised_net_forward.1} parent=11 // pred_check_branch
          %243 = sbr.rel (%p241) target = $region28
        $region27: #{supervised_net_forward.1} parent=11 // pred_region
          _
        $region28: #{supervised_net_forward.1} parent=11 // pred_fallthru
          _
      $region12: #{supervised_net_forward.1} parent=5 // pred_fallthru
        _
      %p244 = scmp.lt.s32.totalorder %s18, 2
      // Predicated region
      $region29: #{supervised_net_forward.1} parent=5 // pred_check
        %p245 = pneg %p244
      $region30: #{supervised_net_forward.1} parent=5 // pred_check_branch
        %247 = sbr.rel (%p245) target = $region32
      $region31: #{supervised_net_forward.1} parent=5 // pred_region
        // Predicated region
        $region33: #{supervised_net_forward.1} parent=31 // pred_check
          %p248 = pneg %p38
        $region34: #{supervised_net_forward.1} parent=31 // pred_check_branch
          %250 = sbr.rel (%p248) target = $region36
        $region35: #{supervised_net_forward.1} parent=31 // pred_region
          %p251 = scmp.lt.s32.totalorder %s18, 1
          %s252 = scalar_select %p251, %s18, 1
          %s253 = smul.addr %s252, 2
          %s254 = smul.addr %s253, 4
          %s255 = scalar_lea.vmem %s0, %s254
        $region36: #{supervised_net_forward.1} parent=31 // pred_fallthru
          _
        // Predicated region
        $region37: #{supervised_net_forward.1} parent=31 // pred_check
          %p256 = pneg %p64
        $region38: #{supervised_net_forward.1} parent=31 // pred_check_branch
          %258 = sbr.rel (%p256) target = $region40
        $region39: #{supervised_net_forward.1} parent=31 // pred_region
          %s259 = sand.u32 %s54, 1
          %s260 = scalar_lea.sflag [#allocation3], %s259
          %s261 = sand.u32 %s54, 1
          %s262 = smul.addr %s261, 256
          %s263 = scalar_lea.vmem [#allocation2], %s262
          %265 = vsyncadd %s260, 0
          %s266 = smul.addr %s18, 64
          %s267 = smul.addr %s266, 4
          %s268 = scalar_lea.hbm %s1, %s267
          %s269 = sshll.u32 %s268, 4
          %s270 = int_to_ptr.hbm [resolvable:$true] %s269
          %s271 = sshll.u32 %s263, 4
          %s272 = int_to_ptr.vmem [resolvable:$true] %s271
          %277 = dma.hbm_to_vmem [thread:$0]  %s270, 4096, %s272, %s260, 128, 128, 8
        $region40: #{supervised_net_forward.1} parent=31 // pred_fallthru
          _
      $region32: #{supervised_net_forward.1} parent=5 // pred_fallthru
        _
      %p278 = scmp.le.s32.totalorder 1, %s18
      %p279 = scmp.lt.s32.totalorder %s18, 3
      %p280 = pnand %p278, %p279
      %p281 = pneg %p280
      // Predicated region
      $region41: #{supervised_net_forward.1} parent=5 // pred_check
        _
      $region42: #{supervised_net_forward.1} parent=5 // pred_check_branch
        %283 = sbr.rel (%p280) target = $region44
      $region43: #{supervised_net_forward.1} parent=5 // pred_region
        %s284 = ssub.s32 %s18, 1
        %s285 = sand.u32 %s57, 1
        %s286 = scalar_lea.sflag [#allocation3], %s285
        %s287 = sand.u32 %s57, 1
        %s288 = smul.addr %s287, 256
        %s289 = scalar_lea.vmem [#allocation2], %s288
        // Predicated region
        $region45: #{supervised_net_forward.1} parent=43 // pred_check
          %p290 = pneg %p70
        $region46: #{supervised_net_forward.1} parent=43 // pred_check_branch
          %292 = sbr.rel (%p290) target = $region48
        $region47: #{supervised_net_forward.1} parent=43 // pred_region
          %294 = dma.done %s286, 4096
        $region48: #{supervised_net_forward.1} parent=43 // pred_fallthru
          _
        // Predicated region
        $region49: #{supervised_net_forward.1} parent=43 // pred_check
          %p295 = pneg %p133
        $region50: #{supervised_net_forward.1} parent=43 // pred_check_branch
          %297 = sbr.rel (%p295) target = $region52
        $region51: #{supervised_net_forward.1} parent=43 // pred_region
          %299 = dma.done [#allocation5], 2048
        $region52: #{supervised_net_forward.1} parent=43 // pred_fallthru
          _
        %p300 = scmp.lt.s32.totalorder %s23, 1
        %s301 = scalar_select %p300, %s23, 1
        %s302 = smul.addr %s301, 2
        %s303 = smul.addr %s302, 4
        %s304 = scalar_lea.vmem %s0, %s303
        %p305 = pneg %p44
        %p306 = pneg %p41
        %s307 = sand.u32 %s57, 1
        %s308 = scalar_lea.sflag [#allocation3], %s307
        %s309 = sand.u32 %s57, 1
        %s310 = smul.addr %s309, 256
        %s311 = scalar_lea.vmem [#allocation2], %s310
        %p312 = pneg %p70
        %p313 = pneg %p67
        %p314 = pneg %p91
        %p315 = pneg %p88
        %p316 = pneg %p112
        %p317 = pneg %p109
        %p318 = pneg %p133
        %p319 = pneg %p130
        %p320 = pneg %p154
        %p321 = pneg %p151
        %p322 = pneg %p180
        %p323 = pneg %p177
        %p324 = scmp.lt.s32.totalorder %s23, 1
        %s325 = scalar_select %p324, %s23, 1
        %s326 = smul.addr %s325, 2
        %s327 = smul.addr %s326, 8
        %s328 = scalar_lea.vmem %s6, %s327
        %p329 = pneg %p206
        %p330 = pneg %p203
        %p331 = scmp.lt.s32.totalorder %s23, 1
        %s332 = scalar_select %p331, %s23, 1
        %s333 = smul.addr %s332, 8
        %s334 = scalar_lea.vmem %s7, %s333
        %p335 = scmp.lt.s32.totalorder %s23, 1
        %s336 = scalar_select %p335, %s23, 1
        %s337 = smul.addr %s336, 2
        %s338 = smul.addr %s337, 4
        %s339 = scalar_lea.vmem %s0, %s338
        %p340 = scmp.lt.s32.totalorder %s23, 1
        %s341 = scalar_select %p340, %s23, 1
        %s342 = smul.addr %s341, 2
        %s343 = smul.addr %s342, 8
        %s344 = scalar_lea.vmem %s6, %s343
        %p345 = scmp.lt.s32.totalorder %s23, 1
        %s346 = scalar_select %p345, %s23, 1
        %s347 = smul.addr %s346, 8
        %s348 = scalar_lea.vmem %s7, %s347
        %v349 = vld [vmem:[%s339] sm:$0xff]
        %v350 = vld [vmem:[%s289] sm:$0xff]
        %v351 = vld [vmem:[%s289 + $0x8] sm:$0xff]
        %v352 = vld [vmem:[%s289 + $0x10] sm:$0xff]
        %v353 = vld [vmem:[%s289 + $0x18] sm:$0xff]
        %v354 = vld [vmem:[%s289 + $0x20] sm:$0xff]
        %v355 = vld [vmem:[%s289 + $0x28] sm:$0xff]
        %v356 = vld [vmem:[%s289 + $0x30] sm:$0xff]
        %v357 = vld [vmem:[%s289 + $0x38] sm:$0xff]
        %v358 = vld [vmem:[%s289 + $0x40] sm:$0xff]
        %v359 = vld [vmem:[%s289 + $0x48] sm:$0xff]
        %v360 = vld [vmem:[%s289 + $0x50] sm:$0xff]
        %v361 = vld [vmem:[%s289 + $0x58] sm:$0xff]
        %v362 = vld [vmem:[%s289 + $0x60] sm:$0xff]
        %v363 = vld [vmem:[%s289 + $0x68] sm:$0xff]
        %v364 = vld [vmem:[%s289 + $0x70] sm:$0xff]
        %v365 = vld [vmem:[%s289 + $0x78] sm:$0xff]
        %v366 = vld [vmem:[%s289 + $0x80] sm:$0xff]
        %v367 = vld [vmem:[%s289 + $0x88] sm:$0xff]
        %v368 = vld [vmem:[%s289 + $0x90] sm:$0xff]
        %v369 = vld [vmem:[%s289 + $0x98] sm:$0xff]
        %v370 = vld [vmem:[%s289 + $0xa0] sm:$0xff]
        %v371 = vld [vmem:[%s289 + $0xa8] sm:$0xff]
        %v372 = vld [vmem:[%s289 + $0xb0] sm:$0xff]
        %v373 = vld [vmem:[%s289 + $0xb8] sm:$0xff]
        %v374 = vld [vmem:[%s289 + $0xc0] sm:$0xff]
        %v375 = vld [vmem:[%s289 + $0xc8] sm:$0xff]
        %v376 = vld [vmem:[%s289 + $0xd0] sm:$0xff]
        %v377 = vld [vmem:[%s289 + $0xd8] sm:$0xff]
        %v378 = vld [vmem:[%s289 + $0xe0] sm:$0xff]
        %v379 = vld [vmem:[%s289 + $0xe8] sm:$0xff]
        %v380 = vld [vmem:[%s289 + $0xf0] sm:$0xff]
        %v381 = vld [vmem:[%s289 + $0xf8] sm:$0xff]
        %v383 = vunpack.c.l.b16 %v349
        %v384 = vunpack.c.h.b16 %v349
        %v385 = vpack.c.b16 %v383, %v383
        %v386 = vpack.c.b16 %v384, %v384
        %v421 = vunpack.c.l.b16 %v350
        %v422 = vunpack.c.h.b16 %v350
        %v423 = vunpack.c.l.b16 %v351
        %v424 = vunpack.c.h.b16 %v351
        %v425 = vunpack.c.l.b16 %v352
        %v426 = vunpack.c.h.b16 %v352
        %v427 = vunpack.c.l.b16 %v353
        %v428 = vunpack.c.h.b16 %v353
        %v429 = vunpack.c.l.b16 %v354
        %v430 = vunpack.c.h.b16 %v354
        %v431 = vunpack.c.l.b16 %v355
        %v432 = vunpack.c.h.b16 %v355
        %v433 = vunpack.c.l.b16 %v356
        %v434 = vunpack.c.h.b16 %v356
        %v435 = vunpack.c.l.b16 %v357
        %v436 = vunpack.c.h.b16 %v357
        %v437 = vunpack.c.l.b16 %v358
        %v438 = vunpack.c.h.b16 %v358
        %v439 = vunpack.c.l.b16 %v359
        %v440 = vunpack.c.h.b16 %v359
        %v441 = vunpack.c.l.b16 %v360
        %v442 = vunpack.c.h.b16 %v360
        %v443 = vunpack.c.l.b16 %v361
        %v444 = vunpack.c.h.b16 %v361
        %v445 = vunpack.c.l.b16 %v362
        %v446 = vunpack.c.h.b16 %v362
        %v447 = vunpack.c.l.b16 %v363
        %v448 = vunpack.c.h.b16 %v363
        %v449 = vunpack.c.l.b16 %v364
        %v450 = vunpack.c.h.b16 %v364
        %v451 = vunpack.c.l.b16 %v365
        %v452 = vunpack.c.h.b16 %v365
        %v453 = vunpack.c.l.b16 %v366
        %v454 = vunpack.c.h.b16 %v366
        %v455 = vunpack.c.l.b16 %v367
        %v456 = vunpack.c.h.b16 %v367
        %v457 = vunpack.c.l.b16 %v368
        %v458 = vunpack.c.h.b16 %v368
        %v459 = vunpack.c.l.b16 %v369
        %v460 = vunpack.c.h.b16 %v369
        %v461 = vunpack.c.l.b16 %v370
        %v462 = vunpack.c.h.b16 %v370
        %v463 = vunpack.c.l.b16 %v371
        %v464 = vunpack.c.h.b16 %v371
        %v465 = vunpack.c.l.b16 %v372
        %v466 = vunpack.c.h.b16 %v372
        %v467 = vunpack.c.l.b16 %v373
        %v468 = vunpack.c.h.b16 %v373
        %v469 = vunpack.c.l.b16 %v374
        %v470 = vunpack.c.h.b16 %v374
        %v471 = vunpack.c.l.b16 %v375
        %v472 = vunpack.c.h.b16 %v375
        %v473 = vunpack.c.l.b16 %v376
        %v474 = vunpack.c.h.b16 %v376
        %v475 = vunpack.c.l.b16 %v377
        %v476 = vunpack.c.h.b16 %v377
        %v477 = vunpack.c.l.b16 %v378
        %v478 = vunpack.c.h.b16 %v378
        %v479 = vunpack.c.l.b16 %v379
        %v480 = vunpack.c.h.b16 %v379
        %v481 = vunpack.c.l.b16 %v380
        %v482 = vunpack.c.h.b16 %v380
        %v483 = vunpack.c.l.b16 %v381
        %v484 = vunpack.c.h.b16 %v381
        %v485 = vpack.c.b16 %v423, %v421
        %v486 = vpack.c.b16 %v424, %v422
        %v487 = vpack.c.b16 %v427, %v425
        %v488 = vpack.c.b16 %v428, %v426
        %v489 = vpack.c.b16 %v431, %v429
        %v490 = vpack.c.b16 %v432, %v430
        %v491 = vpack.c.b16 %v435, %v433
        %v492 = vpack.c.b16 %v436, %v434
        %v493 = vpack.c.b16 %v439, %v437
        %v494 = vpack.c.b16 %v440, %v438
        %v495 = vpack.c.b16 %v443, %v441
        %v496 = vpack.c.b16 %v444, %v442
        %v497 = vpack.c.b16 %v447, %v445
        %v498 = vpack.c.b16 %v448, %v446
        %v499 = vpack.c.b16 %v451, %v449
        %v500 = vpack.c.b16 %v452, %v450
        %v501 = vpack.c.b16 %v455, %v453
        %v502 = vpack.c.b16 %v456, %v454
        %v503 = vpack.c.b16 %v459, %v457
        %v504 = vpack.c.b16 %v460, %v458
        %v505 = vpack.c.b16 %v463, %v461
        %v506 = vpack.c.b16 %v464, %v462
        %v507 = vpack.c.b16 %v467, %v465
        %v508 = vpack.c.b16 %v468, %v466
        %v509 = vpack.c.b16 %v471, %v469
        %v510 = vpack.c.b16 %v472, %v470
        %v511 = vpack.c.b16 %v475, %v473
        %v512 = vpack.c.b16 %v476, %v474
        %v513 = vpack.c.b16 %v479, %v477
        %v514 = vpack.c.b16 %v480, %v478
        %v515 = vpack.c.b16 %v483, %v481
        %v516 = vpack.c.b16 %v484, %v482
        %549 = vmatpush.bf16.msra.mxu0 %v499
        %550 = vmatpush.bf16.msra.mxu0 %v497
        %551 = vmatpush.bf16.msra.mxu0 %v495
        %552 = vmatpush.bf16.msra.mxu0 %v493
        %553 = vmatpush.bf16.msra.mxu0 %v491
        %554 = vmatpush.bf16.msra.mxu0 %v489
        %555 = vmatpush.bf16.msra.mxu0 %v487
        %556 = vmatpush.bf16.msra.mxu0 %v485
        %557 = vmatmul.bf16.gmra.mxu0 %v385
        %v558 = vpop.f32.mrf.mxu0
        %v559 = vadd.f32 0.0, %v558
        %v560 = vpop.f32.mrf.mxu0
        %561 = vdwg.mxu0
        %562 = vmatpush.bf16.msra.mxu0 %v515
        %563 = vmatpush.bf16.msra.mxu0 %v513
        %564 = vmatpush.bf16.msra.mxu0 %v511
        %565 = vmatpush.bf16.msra.mxu0 %v509
        %566 = vmatpush.bf16.msra.mxu0 %v507
        %567 = vmatpush.bf16.msra.mxu0 %v505
        %568 = vmatpush.bf16.msra.mxu0 %v503
        %569 = vmatpush.bf16.msra.mxu0 %v501
        %570 = vmatmul.bf16.gmra.mxu0 %v386
        %v571 = vpop.f32.mrf.mxu0
        %v572 = vadd.f32 %v559, %v571
        %v573 = vpop.f32.mrf.mxu0
        %574 = vdwg.mxu0
        %575 = vmatpush.bf16.msra.mxu0 %v500
        %576 = vmatpush.bf16.msra.mxu0 %v498
        %577 = vmatpush.bf16.msra.mxu0 %v496
        %578 = vmatpush.bf16.msra.mxu0 %v494
        %579 = vmatpush.bf16.msra.mxu0 %v492
        %580 = vmatpush.bf16.msra.mxu0 %v490
        %581 = vmatpush.bf16.msra.mxu0 %v488
        %582 = vmatpush.bf16.msra.mxu0 %v486
        %583 = vmatmul.bf16.gmra.mxu0 %v385
        %v584 = vpop.f32.mrf.mxu0
        %v585 = vadd.f32 0.0, %v584
        %v586 = vpop.f32.mrf.mxu0
        %587 = vdwg.mxu0
        %588 = vmatpush.bf16.msra.mxu0 %v516
        %589 = vmatpush.bf16.msra.mxu0 %v514
        %590 = vmatpush.bf16.msra.mxu0 %v512
        %591 = vmatpush.bf16.msra.mxu0 %v510
        %592 = vmatpush.bf16.msra.mxu0 %v508
        %593 = vmatpush.bf16.msra.mxu0 %v506
        %594 = vmatpush.bf16.msra.mxu0 %v504
        %595 = vmatpush.bf16.msra.mxu0 %v502
        %596 = vmatmul.bf16.gmra.mxu0 %v386
        %v597 = vpop.f32.mrf.mxu0
        %v598 = vadd.f32 %v585, %v597
        %v599 = vpop.f32.mrf.mxu0
        %600 = vdwg.mxu0
        %v601 = vtanh.pop %v572
        %v602 = vtanh.pop %v598
        %v603 = vrot.slane %v601, 4
        %v604 = vadd.f32 %v601, %v603
        %v605 = vrot.slane %v604, 2
        %v606 = vadd.f32 %v604, %v605
        %v607 = vrot.slane %v606, 1
        %v608 = vadd.f32 %v606, %v607
        %v609 = vrot.slane %v602, 4
        %v610 = vadd.f32 %v602, %v609
        %v611 = vrot.slane %v610, 2
        %v612 = vadd.f32 %v610, %v611
        %v613 = vrot.slane %v612, 1
        %v614 = vadd.f32 %v612, %v613
        %v615 = vmul.f32 %v608, 0.125
        %v616 = vmul.f32 %v614, 0.125
        %v617 = vmul.f32 %v601, %v601
        %v618 = vmul.f32 %v602, %v602
        %v619 = vrot.slane %v617, 4
        %v620 = vadd.f32 %v617, %v619
        %v621 = vrot.slane %v620, 2
        %v622 = vadd.f32 %v620, %v621
        %v623 = vrot.slane %v622, 1
        %v624 = vadd.f32 %v622, %v623
        %v625 = vrot.slane %v618, 4
        %v626 = vadd.f32 %v618, %v625
        %v627 = vrot.slane %v626, 2
        %v628 = vadd.f32 %v626, %v627
        %v629 = vrot.slane %v628, 1
        %v630 = vadd.f32 %v628, %v629
        %v631 = vmul.f32 %v624, 0.125
        %v632 = vmul.f32 %v630, 0.125
        %v633 = vmul.f32 %v615, %v615
        %v634 = vmul.f32 %v616, %v616
        %v635 = vsub.f32 %v631, %v633
        %v636 = vsub.f32 %v632, %v634
        %v637 = vmax.f32 %v635, 0.0
        %v638 = vmax.f32 %v636, 0.0
        %v639 = vadd.f32 %v637, 1e-05
        %v640 = vadd.f32 %v638, 1e-05
        %v641 = vrsqrt.pop %v639
        %v642 = vmul.f32 %v641, %v639
        %v643 = vmul.f32 %v642, %v641
        %v644 = vmul.f32 0.5, %v643
        %v645 = vsub.f32 1.5, %v644
        %v646 = vmul.f32 %v641, %v645
        %vm647 = vweird.f32 %v639
        %vm648 = vweird.f32 %v641
        %vm649 = vmor %vm647, %vm648
        %v650 = vsel %vm649, %v641, %v646
        %v651 = vrsqrt.pop %v640
        %v652 = vmul.f32 %v651, %v640
        %v653 = vmul.f32 %v652, %v651
        %v654 = vmul.f32 0.5, %v653
        %v655 = vsub.f32 1.5, %v654
        %v656 = vmul.f32 %v651, %v655
        %vm657 = vweird.f32 %v640
        %vm658 = vweird.f32 %v651
        %vm659 = vmor %vm657, %vm658
        %v660 = vsel %vm659, %v651, %v656
        %v661 = vsub.f32 %v601, %v615
        %v662 = vsub.f32 %v602, %v616
        %v663 = vld [vmem:[%s2] sm:$0x3]
        %v665 = vperm.slane %v663, 0
        %v666 = vperm.slane %v663, 1
        %v669 = vmul.f32 %v650, %v665
        %v670 = vmul.f32 %v660, %v666
        %v671 = vperm.slane %v669, 0
        %v672 = vperm.slane %v670, 0
        %v673 = vmul.f32 %v661, %v671
        %v674 = vmul.f32 %v662, %v672
        %v675 = vld [vmem:[%s3] sm:$0x3]
        %v677 = vperm.slane %v675, 0
        %v678 = vperm.slane %v675, 1
        %v681 = vadd.f32 %v673, %v677
        %v682 = vadd.f32 %v674, %v678
        %683 = vst [vmem:[%s344] sm:$0xff] %v681
        %684 = vst [vmem:[%s344 + $0x8] sm:$0xff] %v682
        %v685 = vpack.c.bf16 %v681, %v681
        %v686 = vpack.c.bf16 %v682, %v682
        %v687 = vld [vmem:[#allocation4] sm:$0xf]
        %v688 = vld [vmem:[#allocation4 + $0x4] sm:$0xf]
        %v689 = vld [vmem:[#allocation4 + $0x8] sm:$0xf]
        %v690 = vld [vmem:[#allocation4 + $0xc] sm:$0xf]
        %v691 = vld [vmem:[#allocation4 + $0x10] sm:$0xf]
        %v692 = vld [vmem:[#allocation4 + $0x14] sm:$0xf]
        %v693 = vld [vmem:[#allocation4 + $0x18] sm:$0xf]
        %v694 = vld [vmem:[#allocation4 + $0x1c] sm:$0xf]
        %v695 = vld [vmem:[#allocation4 + $0x20] sm:$0xf]
        %v696 = vld [vmem:[#allocation4 + $0x24] sm:$0xf]
        %v697 = vld [vmem:[#allocation4 + $0x28] sm:$0xf]
        %v698 = vld [vmem:[#allocation4 + $0x2c] sm:$0xf]
        %v699 = vld [vmem:[#allocation4 + $0x30] sm:$0xf]
        %v700 = vld [vmem:[#allocation4 + $0x34] sm:$0xf]
        %v701 = vld [vmem:[#allocation4 + $0x38] sm:$0xf]
        %v702 = vld [vmem:[#allocation4 + $0x3c] sm:$0xf]
        %v703 = vld [vmem:[#allocation4 + $0x40] sm:$0xf]
        %v704 = vld [vmem:[#allocation4 + $0x44] sm:$0xf]
        %v705 = vld [vmem:[#allocation4 + $0x48] sm:$0xf]
        %v706 = vld [vmem:[#allocation4 + $0x4c] sm:$0xf]
        %v707 = vld [vmem:[#allocation4 + $0x50] sm:$0xf]
        %v708 = vld [vmem:[#allocation4 + $0x54] sm:$0xf]
        %v709 = vld [vmem:[#allocation4 + $0x58] sm:$0xf]
        %v710 = vld [vmem:[#allocation4 + $0x5c] sm:$0xf]
        %v711 = vld [vmem:[#allocation4 + $0x60] sm:$0xf]
        %v712 = vld [vmem:[#allocation4 + $0x64] sm:$0xf]
        %v713 = vld [vmem:[#allocation4 + $0x68] sm:$0xf]
        %v714 = vld [vmem:[#allocation4 + $0x6c] sm:$0xf]
        %v715 = vld [vmem:[#allocation4 + $0x70] sm:$0xf]
        %v716 = vld [vmem:[#allocation4 + $0x74] sm:$0xf]
        %v717 = vld [vmem:[#allocation4 + $0x78] sm:$0xf]
        %v718 = vld [vmem:[#allocation4 + $0x7c] sm:$0xf]
        %v719 = vld [vmem:[%s5] sm:$0x1]
        %v721 = vperm.slane %v719, 0
        %v755 = vunpack.c.l.b16 %v687
        %v756 = vunpack.c.l.b16 %v688
        %v757 = vunpack.c.l.b16 %v689
        %v758 = vunpack.c.l.b16 %v690
        %v759 = vunpack.c.l.b16 %v691
        %v760 = vunpack.c.l.b16 %v692
        %v761 = vunpack.c.l.b16 %v693
        %v762 = vunpack.c.l.b16 %v694
        %v763 = vunpack.c.l.b16 %v695
        %v764 = vunpack.c.l.b16 %v696
        %v765 = vunpack.c.l.b16 %v697
        %v766 = vunpack.c.l.b16 %v698
        %v767 = vunpack.c.l.b16 %v699
        %v768 = vunpack.c.l.b16 %v700
        %v769 = vunpack.c.l.b16 %v701
        %v770 = vunpack.c.l.b16 %v702
        %v771 = vunpack.c.l.b16 %v703
        %v772 = vunpack.c.l.b16 %v704
        %v773 = vunpack.c.l.b16 %v705
        %v774 = vunpack.c.l.b16 %v706
        %v775 = vunpack.c.l.b16 %v707
        %v776 = vunpack.c.l.b16 %v708
        %v777 = vunpack.c.l.b16 %v709
        %v778 = vunpack.c.l.b16 %v710
        %v779 = vunpack.c.l.b16 %v711
        %v780 = vunpack.c.l.b16 %v712
        %v781 = vunpack.c.l.b16 %v713
        %v782 = vunpack.c.l.b16 %v714
        %v783 = vunpack.c.l.b16 %v715
        %v784 = vunpack.c.l.b16 %v716
        %v785 = vunpack.c.l.b16 %v717
        %v786 = vunpack.c.l.b16 %v718
        %v787 = vpack.c.b16 %v756, %v755
        %v788 = vpack.c.b16 %v758, %v757
        %v789 = vpack.c.b16 %v760, %v759
        %v790 = vpack.c.b16 %v762, %v761
        %v791 = vpack.c.b16 %v764, %v763
        %v792 = vpack.c.b16 %v766, %v765
        %v793 = vpack.c.b16 %v768, %v767
        %v794 = vpack.c.b16 %v770, %v769
        %v795 = vpack.c.b16 %v772, %v771
        %v796 = vpack.c.b16 %v774, %v773
        %v797 = vpack.c.b16 %v776, %v775
        %v798 = vpack.c.b16 %v778, %v777
        %v799 = vpack.c.b16 %v780, %v779
        %v800 = vpack.c.b16 %v782, %v781
        %v801 = vpack.c.b16 %v784, %v783
        %v802 = vpack.c.b16 %v786, %v785
        %819 = vmatpush.bf16.msra.mxu0 %v794
        %820 = vmatpush.bf16.msra.mxu0 %v793
        %821 = vmatpush.bf16.msra.mxu0 %v792
        %822 = vmatpush.bf16.msra.mxu0 %v791
        %823 = vmatpush.bf16.msra.mxu0 %v790
        %824 = vmatpush.bf16.msra.mxu0 %v789
        %825 = vmatpush.bf16.msra.mxu0 %v788
        %826 = vmatpush.bf16.msra.mxu0 %v787
        %827 = vmatmul.bf16.gmra.mxu0 %v685
        %v828 = vpop.f32.mrf.mxu0
        %v829 = vadd.f32 %v721, %v828
        %v830 = vpop.f32.mrf.mxu0
        %831 = vdwg.mxu0
        %832 = vmatpush.bf16.msra.mxu0 %v802
        %833 = vmatpush.bf16.msra.mxu0 %v801
        %834 = vmatpush.bf16.msra.mxu0 %v800
        %835 = vmatpush.bf16.msra.mxu0 %v799
        %836 = vmatpush.bf16.msra.mxu0 %v798
        %837 = vmatpush.bf16.msra.mxu0 %v797
        %838 = vmatpush.bf16.msra.mxu0 %v796
        %839 = vmatpush.bf16.msra.mxu0 %v795
        %840 = vmatmul.bf16.gmra.mxu0 %v686
        %v841 = vpop.f32.mrf.mxu0
        %v842 = vadd.f32 %v829, %v841
        %v843 = vpop.f32.mrf.mxu0
        %844 = vdwg.mxu0
        %845 = vst [vmem:[%s348] sm:$0xff] %v842
        %p846 = scmp.lt.s32.totalorder %s23, 1
        %s847 = scalar_select %p846, %s23, 1
        %s848 = smul.addr %s847, 2
        %s849 = smul.addr %s848, 8
        %s850 = scalar_lea.vmem %s6, %s849
        %p851 = scmp.lt.s32.totalorder %s23, 1
        %s852 = scalar_select %p851, %s23, 1
        %s853 = smul.addr %s852, 8
        %s854 = scalar_lea.vmem %s7, %s853
        // Predicated region
        $region53: #{supervised_net_forward.1} parent=43 // pred_check
          %p855 = pneg %p177
        $region54: #{supervised_net_forward.1} parent=43 // pred_check_branch
          %857 = sbr.rel (%p855) target = $region56
        $region55: #{supervised_net_forward.1} parent=43 // pred_region
          _
        $region56: #{supervised_net_forward.1} parent=43 // pred_fallthru
          _
        // Predicated region
        $region57: #{supervised_net_forward.1} parent=43 // pred_check
          %p858 = pneg %p203
        $region58: #{supervised_net_forward.1} parent=43 // pred_check_branch
          %860 = sbr.rel (%p858) target = $region60
        $region59: #{supervised_net_forward.1} parent=43 // pred_region
          _
        $region60: #{supervised_net_forward.1} parent=43 // pred_fallthru
          _
      $region44: #{supervised_net_forward.1} parent=5 // pred_fallthru
        _
      %p861 = scmp.le.s32.totalorder 2, %s18
      // Predicated region
      $region61: #{supervised_net_forward.1} parent=5 // pred_check
        %p862 = pneg %p861
      $region62: #{supervised_net_forward.1} parent=5 // pred_check_branch
        %864 = sbr.rel (%p862) target = $region64
      $region63: #{supervised_net_forward.1} parent=5 // pred_region
        %s865 = ssub.s32 %s18, 2
        // Predicated region
        $region65: #{supervised_net_forward.1} parent=63 // pred_check
          %p866 = pneg %p183
        $region66: #{supervised_net_forward.1} parent=63 // pred_check_branch
          %868 = sbr.rel (%p866) target = $region68
        $region67: #{supervised_net_forward.1} parent=63 // pred_region
          %p869 = scmp.lt.s32.totalorder %s24, 1
          %s870 = scalar_select %p869, %s24, 1
          %s871 = smul.addr %s870, 2
          %s872 = smul.addr %s871, 8
          %s873 = scalar_lea.vmem %s6, %s872
        $region68: #{supervised_net_forward.1} parent=63 // pred_fallthru
          _
        // Predicated region
        $region69: #{supervised_net_forward.1} parent=63 // pred_check
          %p874 = pneg %p209
        $region70: #{supervised_net_forward.1} parent=63 // pred_check_branch
          %876 = sbr.rel (%p874) target = $region72
        $region71: #{supervised_net_forward.1} parent=63 // pred_region
          %p877 = scmp.lt.s32.totalorder %s24, 1
          %s878 = scalar_select %p877, %s24, 1
          %s879 = smul.addr %s878, 8
          %s880 = scalar_lea.vmem %s7, %s879
        $region72: #{supervised_net_forward.1} parent=63 // pred_fallthru
          _
      $region64: #{supervised_net_forward.1} parent=5 // pred_fallthru
        _
    $region6: #{supervised_net_forward.1} parent=1 // loop_footer
      %s22 = sadd.s32 1, %s18
    $region7: #{supervised_net_forward.1} parent=1 // loop_footer_branch
      %17 = sbr.rel target = $region3
    $region8: #{supervised_net_forward.1} parent=1 // loop_exit
      _
    %881 = vsyncpa [#allocation3], 1
    %s882 = scalar_lea.sflag [#allocation3], 1
    %883 = vsyncpa %s882, 1
    %884 = vsyncpa [#allocation5], 1

</llo_original>
